<compile_context>
chip_gen: v5e
topology: v5e:2x2
jax: 0.10.0
libtpu: 0.0.40
codegen_flags: <defaults>
</compile_context>

<pallas_src>
import functools

import jax
import jax.numpy as jnp
from jax import lax
from jax.experimental import pallas as pl
from jax.experimental.pallas import tpu as pltpu


# --------------------------------------------------------------------------
# Helpers
# --------------------------------------------------------------------------
def _round_up(n, m):
    return ((n + m - 1) // m) * m


def _pick_block(T, target, preferred=(128, 16, 8)):
    """Largest divisor of T <= target that is a multiple of a preferred size."""
    if T <= target:
        return T
    for mult in preferred:
        cand = (target // mult) * mult
        while cand >= mult:
            if T % cand == 0:
                return cand
            cand -= mult
    # TODO(synk): pad T (with score masking) instead of one whole-sequence block.
    return T


def _vmem_limit_bytes():
    """Per-generation VMEM budget (v7x has 64 MiB, v5e/v6e 128 MiB)."""
    try:
        cap = int(pltpu.get_tpu_info().vmem_capacity_bytes)
    except Exception:
        cap = 64 * 1024 * 1024          # conservative default = v7x
    return min((cap * 3) // 4, 100 * 1024 * 1024)


# --------------------------------------------------------------------------
# Fused fast path: QKV projection + attention + output projection, one call.
# Used when the whole per-batch working set fits comfortably in VMEM.
# --------------------------------------------------------------------------
def _fused_attn_kernel(x_ref, wqkv_ref, bqkv_ref, wo_ref, bo_ref, out_ref, *, hp):
    x = x_ref[...]                                                    # (T, Dp) bf16
    qkv = jnp.dot(x, wqkv_ref[...],
                  preferred_element_type=jnp.float32) + bqkv_ref[...]  # (T, 3Hp) f32
    # 128-aligned in-VMEM splits (Hp is a multiple of 128).
    q = qkv[:, :hp].astype(jnp.bfloat16)          # already pre-scaled by 1/sqrt(H)
    k = qkv[:, hp:2 * hp].astype(jnp.bfloat16)
    v = qkv[:, 2 * hp:].astype(jnp.bfloat16)

    # scores = q @ k^T (contract dim 1 of both -> no explicit transpose op).
    s = lax.dot_general(q, k, (((1,), (1,)), ((), ())),
                        preferred_element_type=jnp.float32)           # (T, T)
    m = jnp.max(s, axis=-1, keepdims=True)
    p = jnp.exp(s - m)
    l = jnp.sum(p, axis=-1, keepdims=True)
    o = jnp.dot(p.astype(jnp.bfloat16), v, preferred_element_type=jnp.float32)
    o = o * pl.reciprocal(l, approx=True)                             # EUP slot

    out = jnp.dot(o.astype(jnp.bfloat16), wo_ref[...],
                  preferred_element_type=jnp.float32) + bo_ref[...]   # (T, Dp)
    out_ref[...] = out.astype(out_ref.dtype)


# --------------------------------------------------------------------------
# General path, kernel 1: fused QKV projection -> three separate bf16 outputs
# (no HBM round-trip through a packed qkv array, no unaligned XLA slices).
# --------------------------------------------------------------------------
def _qkv_proj_kernel(x_ref, wqkv_ref, bqkv_ref, q_ref, k_ref, v_ref, *, hp):
    qkv = jnp.dot(x_ref[...], wqkv_ref[...],
                  preferred_element_type=jnp.float32) + bqkv_ref[...]  # (tp, 3Hp) f32
    q_ref[...] = qkv[:, :hp].astype(q_ref.dtype)
    k_ref[...] = qkv[:, hp:2 * hp].astype(k_ref.dtype)
    v_ref[...] = qkv[:, 2 * hp:].astype(v_ref.dtype)


# --------------------------------------------------------------------------
# General path, kernel 2: flash attention with full-sequence K/V resident in
# VMEM (re-DMA only on batch change), in-kernel kv loop + online softmax,
# then the output projection.
# --------------------------------------------------------------------------
def _flash_attn_kernel(q_ref, k_ref, v_ref, wo_ref, bo_ref, out_ref,
                       m_scr, l_scr, acc_scr, *, tk):
    m_scr[...] = jnp.full(m_scr.shape, -jnp.inf, m_scr.dtype)
    l_scr[...] = jnp.zeros(l_scr.shape, l_scr.dtype)
    acc_scr[...] = jnp.zeros(acc_scr.shape, acc_scr.dtype)

    q = q_ref[...]                                  # (tq, Hp) bf16, pre-scaled
    n_kv = k_ref.shape[0] // tk                     # static

    @pl.loop(0, n_kv)
    def _kv_step(i):
        off = pl.multiple_of(i * tk, tk)
        kt = k_ref[pl.ds(off, tk), :]               # (tk, Hp) bf16
        vt = v_ref[pl.ds(off, tk), :]               # (tk, Hp) bf16
        # TODO(synk): verify via pl.lower_as_mlir that this A@B^T dot_general
        # lowers without a vxpose of the K tile; if so, emit K pre-transposed
        # from kernel 1 instead.
        s = lax.dot_general(q, kt, (((1,), (1,)), ((), ())),
                            preferred_element_type=jnp.float32)       # (tq, tk)
        m_prev = m_scr[...]
        m_new = jnp.maximum(m_prev, jnp.max(s, axis=-1, keepdims=True))
        alpha = jnp.exp(m_prev - m_new)
        p = jnp.exp(s - m_new)                      # f32 (safe on v5e too)
        l_scr[...] = alpha * l_scr[...] + jnp.sum(p, axis=-1, keepdims=True)
        acc_scr[...] = alpha * acc_scr[...] + jnp.dot(
            p.astype(jnp.bfloat16), vt, preferred_element_type=jnp.float32)
        m_scr[...] = m_new

    o = acc_scr[...] * pl.reciprocal(l_scr[...], approx=True)         # (tq, Hp)
    out = jnp.dot(o.astype(jnp.bfloat16), wo_ref[...],
                  preferred_element_type=jnp.float32) + bo_ref[...]   # (tq, Dp)
    out_ref[...] = out.astype(out_ref.dtype)


# --------------------------------------------------------------------------
# Wrapper
# --------------------------------------------------------------------------
def shattn_forward(x, params, *, q_block=512, kv_block=512, force_general=False):
    """x: (B, T, D) float32.  params: PyTorch-layout weights/biases."""
    B, T, D = x.shape
    H = params["wq"].shape[0]
    scale = 1.0 / (float(H) ** 0.5)

    # Lane-dense padded sizes (zero padding is exact: padded q/k columns are
    # zero so scores are unchanged; padded v / wo / bo entries are zero so
    # padded output columns are zero and get sliced away).
    Hp = _round_up(H, 128)
    Dp = _round_up(D, 128)

    def pad_to(a, shape):
        return jnp.pad(a, [(0, s - d) for d, s in zip(a.shape, shape)])

    # One-time parameter transform:
    #  * nn.Linear stores (out, in) -> transpose to (in, out) for x @ W.
    #  * fuse Q|K|V into a single (Dp, 3Hp) weight / (1, 3Hp) bias.
    #  * fold the 1/sqrt(H) softmax scale into the Q columns.
    #  * bf16 matmul operands (MXU-native); biases stay f32.
    wqkv = jnp.concatenate(
        [pad_to(params["wq"].T * scale, (Dp, Hp)),
         pad_to(params["wk"].T, (Dp, Hp)),
         pad_to(params["wv"].T, (Dp, Hp))], axis=1).astype(jnp.bfloat16)
    bqkv = jnp.concatenate(
        [pad_to(params["bq"] * scale, (Hp,)),
         pad_to(params["bk"], (Hp,)),
         pad_to(params["bv"], (Hp,))]).reshape(1, 3 * Hp).astype(jnp.float32)
    wo = pad_to(params["wo"].T, (Hp, Dp)).astype(jnp.bfloat16)         # (Hp, Dp)
    bo = pad_to(params["bo"], (Dp,)).reshape(1, Dp).astype(jnp.float32)

    # bf16 x in the wrapper: halves the x HBM->VMEM DMA and tile footprint.
    xb = x.astype(jnp.bfloat16)
    if Dp != D:
        xb = jnp.pad(xb, ((0, 0), (0, 0), (0, Dp - D)))

    vmem_limit = _vmem_limit_bytes()

    # ---- dispatch: fully-fused single kernel when the per-batch working set
    # fits well under the VMEM budget (the demo shape lands here). ----------
    fused_bytes = (
        2 * T * Dp * 2 + 2 * T * Dp * 4                       # x tile + out tile (x2 bufs)
        + 2 * (Dp * 3 * Hp * 2 + 3 * Hp * 4 + Hp * Dp * 2 + Dp * 4)  # weights/biases
        + T * 3 * Hp * 4 + 3 * T * T * 4 + 2 * T * Hp * 4)    # in-kernel intermediates
    use_fused = (not force_general) and fused_bytes <= vmem_limit // 2

    if use_fused:
        out_p = pl.pallas_call(
            functools.partial(_fused_attn_kernel, hp=Hp),
            out_shape=jax.ShapeDtypeStruct((B, T, Dp), x.dtype),
            grid_spec=pltpu.PrefetchScalarGridSpec(
                num_scalar_prefetch=0,
                grid=(B,),
                in_specs=[
                    pl.BlockSpec((None, T, Dp), lambda b: (b, 0, 0)),   # x
                    pl.BlockSpec((Dp, 3 * Hp), lambda b: (0, 0)),       # wqkv
                    pl.BlockSpec((1, 3 * Hp), lambda b: (0, 0)),        # bqkv
                    pl.BlockSpec((Hp, Dp), lambda b: (0, 0)),           # wo
                    pl.BlockSpec((1, Dp), lambda b: (0, 0)),            # bo
                ],
                out_specs=pl.BlockSpec((None, T, Dp), lambda b: (b, 0, 0)),
            ),
            compiler_params=pltpu.CompilerParams(
                dimension_semantics=("parallel",),
                vmem_limit_bytes=vmem_limit),
        )(xb, wqkv, bqkv, wo, bo)
        return out_p[:, :, :D] if Dp != D else out_p

    # ---- general path --------------------------------------------------
    # pass 1: fused QKV projection -> separate q (pre-scaled), k, v, all bf16
    # with lane-dense Hp last dim.
    tp = _pick_block(T, q_block, (16, 8))
    q, k, v = pl.pallas_call(
        functools.partial(_qkv_proj_kernel, hp=Hp),
        out_shape=(jax.ShapeDtypeStruct((B, T, Hp), jnp.bfloat16),
                   jax.ShapeDtypeStruct((B, T, Hp), jnp.bfloat16),
                   jax.ShapeDtypeStruct((B, T, Hp), jnp.bfloat16)),
        grid_spec=pltpu.PrefetchScalarGridSpec(
            num_scalar_prefetch=0,
            grid=(B, T // tp),
            in_specs=[
                pl.BlockSpec((None, tp, Dp), lambda b, t: (b, t, 0)),   # x tile
                pl.BlockSpec((Dp, 3 * Hp), lambda b, t: (0, 0)),        # wqkv
                pl.BlockSpec((1, 3 * Hp), lambda b, t: (0, 0)),         # bqkv
            ],
            out_specs=(pl.BlockSpec((None, tp, Hp), lambda b, t: (b, t, 0)),
                       pl.BlockSpec((None, tp, Hp), lambda b, t: (b, t, 0)),
                       pl.BlockSpec((None, tp, Hp), lambda b, t: (b, t, 0))),
        ),
        compiler_params=pltpu.CompilerParams(
            dimension_semantics=("parallel", "parallel"),
            vmem_limit_bytes=vmem_limit),
    )(xb, wqkv, bqkv)

    # pass 2: flash attention with full-sequence K/V resident per batch
    # (no per-q-tile K/V re-streaming) + output projection.
    # TODO(synk): add a streaming-KV grid variant for T so large that the
    # resident K/V (2 * 2 * T * Hp * 2 bytes) no longer fits in VMEM.
    tq = _pick_block(T, q_block, (16, 8))
    tk = _pick_block(T, kv_block, (128, 16, 8))

    out_p = pl.pallas_call(
        functools.partial(_flash_attn_kernel, tk=tk),
        out_shape=jax.ShapeDtypeStruct((B, T, Dp), x.dtype),
        grid_spec=pltpu.PrefetchScalarGridSpec(
            num_scalar_prefetch=0,
            grid=(B, T // tq),
            in_specs=[
                pl.BlockSpec((None, tq, Hp), lambda b, qi: (b, qi, 0)),  # q tile
                pl.BlockSpec((None, T, Hp), lambda b, qi: (b, 0, 0)),    # K (resident)
                pl.BlockSpec((None, T, Hp), lambda b, qi: (b, 0, 0)),    # V (resident)
                pl.BlockSpec((Hp, Dp), lambda b, qi: (0, 0)),            # wo
                pl.BlockSpec((1, Dp), lambda b, qi: (0, 0)),             # bo
            ],
            out_specs=pl.BlockSpec((None, tq, Dp), lambda b, qi: (b, qi, 0)),
            scratch_shapes=[
                pltpu.VMEM((tq, 1), jnp.float32),    # running max m
                pltpu.VMEM((tq, 1), jnp.float32),    # running denom l
                pltpu.VMEM((tq, Hp), jnp.float32),   # output accumulator
            ],
        ),
        compiler_params=pltpu.CompilerParams(
            dimension_semantics=("parallel", "parallel"),
            vmem_limit_bytes=vmem_limit),
    )(q, k, v, wo, bo)
    return out_p[:, :, :D] if Dp != D else out_p


def shattn_reference(x, params):
    """Pure-JAX f32 reference matching the PyTorch forward."""
    H = params["wq"].shape[0]
    q = x @ params["wq"].T + params["bq"]
    k = x @ params["wk"].T + params["bk"]
    v = x @ params["wv"].T + params["bv"]
    attn = q @ jnp.swapaxes(k, 2, 1) / (H ** 0.5)
    attn = jax.nn.softmax(attn, axis=-1)
    o = attn @ v
    return o @ params["wo"].T + params["bo"]


def _make_params(key, D, H):
    ks = jax.random.split(key, 8)
    s_in = 1.0 / (D ** 0.5)
    s_h = 1.0 / (H ** 0.5)
    return {
        "wq": jax.random.uniform(ks[0], (H, D), jnp.float32, -s_in, s_in),
        "bq": jax.random.uniform(ks[1], (H,),   jnp.float32, -s_in, s_in),
        "wk": jax.random.uniform(ks[2], (H, D), jnp.float32, -s_in, s_in),
        "bk": jax.random.uniform(ks[3], (H,),   jnp.float32, -s_in, s_in),
        "wv": jax.random.uniform(ks[4], (H, D), jnp.float32, -s_in, s_in),
        "bv": jax.random.uniform(ks[5], (H,),   jnp.float32, -s_in, s_in),
        "wo": jax.random.uniform(ks[6], (D, H), jnp.float32, -s_h, s_h),
        "bo": jax.random.uniform(ks[7], (D,),   jnp.float32, -s_h, s_h),
    }


if __name__ == "__main__":
    B, T, D, H = 2, 8, 32, 16   # batch, seq, hidden_size, head_size

    key = jax.random.PRNGKey(0)
    kp, kx, kx2 = jax.random.split(key, 3)
    params = _make_params(kp, D, H)
    x = jax.random.normal(kx, (B, T, D), jnp.float32)
    ref = shattn_reference(x, params)

    # 1) fused single-kernel fast path (default dispatch at this size).
    out_fused = jax.block_until_ready(shattn_forward(x, params))
    assert jnp.allclose(out_fused, ref, atol=2e-2, rtol=2e-2), \
        "fused path mismatch vs reference"

    # 2) general (projection + flash) path, forced at the same small shape.
    out_flash = jax.block_until_ready(
        shattn_forward(x, params, force_general=True))
    assert jnp.allclose(out_flash, ref, atol=2e-2, rtol=2e-2), \
        "flash path mismatch vs reference"

    # 3) general path with real tiling: multiple q tiles and an in-kernel
    #    multi-step kv loop (T=256, tiles of 128).
    T2 = 256
    x2 = jax.random.normal(kx2, (B, T2, D), jnp.float32)
    ref2 = shattn_reference(x2, params)
    out2 = jax.block_until_ready(
        shattn_forward(x2, params, q_block=128, kv_block=128,
                       force_general=True))
    assert jnp.allclose(out2, ref2, atol=2e-2, rtol=2e-2), \
        "tiled flash path mismatch vs reference"

    print("KERNEL_OK")
</pallas_src>

<mosaic_0001>
module attributes {stable_mosaic.version = 11 : i64} {
  func.func @_fused_attn_kernel(%arg0: i32, %arg1: memref<1x8x128xbf16, #tpu.memory_space<vmem>>, %arg2: memref<128x384xbf16, #tpu.memory_space<vmem>>, %arg3: memref<1x384xf32, #tpu.memory_space<vmem>>, %arg4: memref<128x128xbf16, #tpu.memory_space<vmem>>, %arg5: memref<1x128xf32, #tpu.memory_space<vmem>>, %arg6: memref<1x8x128xf32, #tpu.memory_space<vmem>>) attributes {dimension_semantics = [#tpu.dimension_semantics<parallel>], iteration_bounds = array<i64: 2>, scalar_prefetch = 0 : i64, scratch_operands = 0 : i64, tpu.core_type = #tpu.core_type<tc>, window_params = [{transform_indices = @transform_0, window_bounds = array<i64: 1, 8, 128>}, {pipeline_mode = #tpu.pipeline_mode<synchronous>, transform_indices = @transform_1, window_bounds = array<i64: 128, 384>}, {pipeline_mode = #tpu.pipeline_mode<synchronous>, transform_indices = @transform_2, window_bounds = array<i64: 1, 384>}, {pipeline_mode = #tpu.pipeline_mode<synchronous>, transform_indices = @transform_3, window_bounds = array<i64: 128, 128>}, {pipeline_mode = #tpu.pipeline_mode<synchronous>, transform_indices = @transform_4, window_bounds = array<i64: 1, 128>}, {transform_indices = @transform_5, window_bounds = array<i64: 1, 8, 128>}]} {
    %c0 = arith.constant 0 : index
    %c0_0 = arith.constant 0 : index
    %c0_1 = arith.constant 0 : index
    %0 = vector.load %arg1[%c0, %c0_0, %c0_1] : memref<1x8x128xbf16, #tpu.memory_space<vmem>>, vector<1x8x128xbf16>
    %1 = vector.shape_cast %0 : vector<1x8x128xbf16> to vector<8x128xbf16>
    %c0_2 = arith.constant 0 : index
    %c0_3 = arith.constant 0 : index
    %2 = vector.load %arg2[%c0_2, %c0_3] : memref<128x384xbf16, #tpu.memory_space<vmem>>, vector<128x384xbf16>
    %cst = arith.constant dense<0.000000e+00> : vector<8x384xf32>
    %3 = tpu.matmul %1, %2, %cst {dimension_numbers = #tpu.dot_dimension_numbers<[1], [0], [0], [1], [0, 0, 1, 1], [], []>} : vector<8x128xbf16>, vector<128x384xbf16>, vector<8x384xf32> -> vector<8x384xf32>
    %c0_4 = arith.constant 0 : index
    %c0_5 = arith.constant 0 : index
    %4 = vector.load %arg3[%c0_4, %c0_5] : memref<1x384xf32, #tpu.memory_space<vmem>>, vector<1x384xf32>
    %5 = vector.broadcast %4 : vector<1x384xf32> to vector<8x384xf32>
    %6 = arith.addf %3, %5 : vector<8x384xf32>
    %7 = vector.extract_strided_slice %6 {offsets = [0, 0], sizes = [8, 128], strides = [1, 1]} : vector<8x384xf32> to vector<8x128xf32>
    %8 = arith.truncf %7 : vector<8x128xf32> to vector<8x128xbf16>
    %9 = vector.extract_strided_slice %6 {offsets = [0, 128], sizes = [8, 128], strides = [1, 1]} : vector<8x384xf32> to vector<8x128xf32>
    %10 = arith.truncf %9 : vector<8x128xf32> to vector<8x128xbf16>
    %11 = vector.extract_strided_slice %6 {offsets = [0, 256], sizes = [8, 128], strides = [1, 1]} : vector<8x384xf32> to vector<8x128xf32>
    %12 = arith.truncf %11 : vector<8x128xf32> to vector<8x128xbf16>
    %cst_6 = arith.constant dense<0.000000e+00> : vector<8x8xf32>
    %13 = tpu.matmul %8, %10, %cst_6 {dimension_numbers = #tpu.dot_dimension_numbers<[1], [1], [0], [0], [0, 0, 1, 0], [], []>} : vector<8x128xbf16>, vector<8x128xbf16>, vector<8x8xf32> -> vector<8x8xf32>
    %cst_7 = arith.constant dense<0xFF800000> : vector<8xf32>
    %14 = vector.multi_reduction <maximumf>, %13, %cst_7 [1] : vector<8x8xf32> to vector<8xf32>
    %15 = vector.shape_cast %14 : vector<8xf32> to vector<8x1xf32>
    %16 = vector.broadcast %15 : vector<8x1xf32> to vector<8x8xf32>
    %17 = arith.subf %13, %16 : vector<8x8xf32>
    %18 = math.exp %17 : vector<8x8xf32>
    %cst_8 = arith.constant dense<0.000000e+00> : vector<8xf32>
    %19 = vector.multi_reduction <add>, %18, %cst_8 [1] : vector<8x8xf32> to vector<8xf32>
    %20 = vector.shape_cast %19 : vector<8xf32> to vector<8x1xf32>
    %21 = arith.truncf %18 : vector<8x8xf32> to vector<8x8xbf16>
    %cst_9 = arith.constant dense<0.000000e+00> : vector<8x128xf32>
    %22 = tpu.matmul %21, %12, %cst_9 {dimension_numbers = #tpu.dot_dimension_numbers<[1], [0], [0], [1], [0, 0, 1, 1], [], []>} : vector<8x8xbf16>, vector<8x128xbf16>, vector<8x128xf32> -> vector<8x128xf32>
    %23 = tpu.reciprocal %20 {approx = true} : vector<8x1xf32> -> vector<8x1xf32>
    %24 = vector.broadcast %23 : vector<8x1xf32> to vector<8x128xf32>
    %25 = arith.mulf %22, %24 : vector<8x128xf32>
    %26 = arith.truncf %25 : vector<8x128xf32> to vector<8x128xbf16>
    %c0_10 = arith.constant 0 : index
    %c0_11 = arith.constant 0 : index
    %27 = vector.load %arg4[%c0_10, %c0_11] : memref<128x128xbf16, #tpu.memory_space<vmem>>, vector<128x128xbf16>
    %cst_12 = arith.constant dense<0.000000e+00> : vector<8x128xf32>
    %28 = tpu.matmul %26, %27, %cst_12 {dimension_numbers = #tpu.dot_dimension_numbers<[1], [0], [0], [1], [0, 0, 1, 1], [], []>} : vector<8x128xbf16>, vector<128x128xbf16>, vector<8x128xf32> -> vector<8x128xf32>
    %c0_13 = arith.constant 0 : index
    %c0_14 = arith.constant 0 : index
    %29 = vector.load %arg5[%c0_13, %c0_14] : memref<1x128xf32, #tpu.memory_space<vmem>>, vector<1x128xf32>
    %30 = vector.broadcast %29 : vector<1x128xf32> to vector<8x128xf32>
    %31 = arith.addf %28, %30 : vector<8x128xf32>
    %c0_15 = arith.constant 0 : index
    %c0_16 = arith.constant 0 : index
    %c0_17 = arith.constant 0 : index
    %32 = vector.load %arg6[%c0_15, %c0_16, %c0_17] : memref<1x8x128xf32, #tpu.memory_space<vmem>>, vector<1x8x128xf32>
    %33 = vector.shape_cast %32 : vector<1x8x128xf32> to vector<8x128xf32>
    %34 = vector.shape_cast %31 : vector<8x128xf32> to vector<1x8x128xf32>
    tpu.vector_store %arg6[%c0_15, %c0_16, %c0_17], %34 {strides = array<i32>} : memref<1x8x128xf32, #tpu.memory_space<vmem>>, vector<1x8x128xf32>,
    return
  }
  func.func @transform_0(%arg0: i32) -> (i32, i32, i32) {
    %c0_i32 = arith.constant 0 : i32
    %c0_i32_0 = arith.constant 0 : i32
    %c0_i32_1 = arith.constant 0 : i32
    return %arg0, %c0_i32, %c0_i32_0 : i32, i32, i32
  }
  func.func @transform_1(%arg0: i32) -> (i32, i32) {
    %c0_i32 = arith.constant 0 : i32
    %c0_i32_0 = arith.constant 0 : i32
    %c0_i32_1 = arith.constant 0 : i32
    return %c0_i32, %c0_i32_0 : i32, i32
  }
  func.func @transform_2(%arg0: i32) -> (i32, i32) {
    %c0_i32 = arith.constant 0 : i32
    %c0_i32_0 = arith.constant 0 : i32
    %c0_i32_1 = arith.constant 0 : i32
    return %c0_i32, %c0_i32_0 : i32, i32
  }
  func.func @transform_3(%arg0: i32) -> (i32, i32) {
    %c0_i32 = arith.constant 0 : i32
    %c0_i32_0 = arith.constant 0 : i32
    %c0_i32_1 = arith.constant 0 : i32
    return %c0_i32, %c0_i32_0 : i32, i32
  }
  func.func @transform_4(%arg0: i32) -> (i32, i32) {
    %c0_i32 = arith.constant 0 : i32
    %c0_i32_0 = arith.constant 0 : i32
    %c0_i32_1 = arith.constant 0 : i32
    return %c0_i32, %c0_i32_0 : i32, i32
  }
  func.func @transform_5(%arg0: i32) -> (i32, i32, i32) {
    %c0_i32 = arith.constant 0 : i32
    %c0_i32_0 = arith.constant 0 : i32
    %c0_i32_1 = arith.constant 0 : i32
    return %arg0, %c0_i32, %c0_i32_0 : i32, i32, i32
  }
}

</mosaic_0001>

<llo_original>
// kernel: tpu_custom_call.1
$region0: #{tpu_custom_call.1}
  #allocation0 [shape = 'u32[]', space=smem, size = 0x4, offset = 0x4, fixed_abs, tag = 'smem constant byte address 0x4 - core index']
  #allocation1 [shape = 'u32[72,128]{1,0:T(1,128)}', space=vmem, size = 0x9000, scoped, tag = 'internal scratch']
  %s0 = inlined_call_operand.hbm [shape: bf16[2,8,128], index: 0, kind: input, shape index: {}]
  %s1 = inlined_call_operand.hbm [shape: bf16[128,384], index: 1, kind: input, shape index: {}]
  %s2 = inlined_call_operand.hbm [shape: f32[1,384], index: 2, kind: input, shape index: {}]
  %s3 = inlined_call_operand.hbm [shape: bf16[128,128], index: 3, kind: input, shape index: {}]
  %s4 = inlined_call_operand.vmem [shape: f32[1,128], index: 4, kind: input, shape index: {}]
  %s5 = inlined_call_operand.hbm [shape: f32[2,8,128], index: 5, kind: output, shape index: {}]
  %s6 = sld [smem:[#allocation0]]
  $region69: #{tpu_custom_call.1} parent=0
    _
  %s8 = ssub.s32 1, %s6
  %s9 = scalar_select 0, %s8, %s6
  $region1: #{tpu_custom_call.1} parent=0
    #allocation2 [shape = 'u8[4096]{0}', space=vmem, size = 0x1000, scoped, tag = 'input window, operand 0']
    #allocation3 [shape = 's32[2]{0}', space=sflag, size = 0x8, scoped, tag = 'scoped memory for tpu_custom_call.1']
    #allocation4 [shape = 's32[2]{0}', space=sflag, size = 0x8, scoped, tag = 'scoped memory for tpu_custom_call.1']
    #allocation5 [shape = 'u8[98304]{0}', space=vmem, size = 0x18000, scoped, tag = 'input window, operand 1, single buffered']
    #allocation6 [shape = 's32[1]{0}', space=sflag, size = 0x4, scoped, tag = 'scoped memory for tpu_custom_call.1']
    #allocation7 [shape = 'u8[1536]{0}', space=vmem, size = 0x800, scoped, tag = 'input window, operand 2, single buffered']
    #allocation8 [shape = 'u8[32768]{0}', space=vmem, size = 0x8000, scoped, tag = 'input window, operand 3, single buffered']
    #allocation9 [shape = 's32[1]{0}', space=sflag, size = 0x4, scoped, tag = 'scoped memory for tpu_custom_call.1']
    #allocation10 [shape = 'u8[8192]{0}', space=vmem, size = 0x2000, scoped, tag = 'output window, operand 0']
    %10 = vsyncpa [#allocation3], 0
    %s11 = scalar_lea.sflag [#allocation3], 1
    %12 = vsyncpa %s11, 0
    %13 = vsyncpa [#allocation6], 0
    %14 = vsyncpa [#allocation9], 0
    %15 = vsyncpa [#allocation4], 0
    %s16 = scalar_lea.sflag [#allocation4], 1
    %17 = vsyncpa %s16, 0
    loop: start=0, step=1, limit=4
    $region2: #{tpu_custom_call.1} parent=1 // loop_pre_header
      _
    $region3: #{tpu_custom_call.1} parent=1 // loop_header
      %s19 = sphi 0, %s23
      %p20 = scmp.ge.s32.totalorder %s19, 4
      %s29 = sphi 0, %s31
      %s32 = sphi 0, %s29
      %s33 = sphi 0, %s32
      %s49 = sphi 0, %s33
      %s53 = sphi 0, %s53
      %s55 = sphi 0, %s53
      %s56 = sphi 0, %s55
      %s70 = sphi 0, %s56
      %s74 = sphi 0, %s74
      %s76 = sphi 0, %s74
      %s77 = sphi 0, %s76
      %s91 = sphi 0, %s77
      %s95 = sphi 0, %s95
      %s97 = sphi 0, %s95
      %s98 = sphi 0, %s97
      %s112 = sphi 0, %s98
      %s116 = sphi 0, %s116
      %s118 = sphi 0, %s116
      %s119 = sphi 0, %s118
      %s133 = sphi 0, %s119
      %s139 = sphi 0, %s141
      %s142 = sphi 0, %s139
      %s143 = sphi 0, %s142
      %s159 = sphi 0, %s143
    $region4: #{tpu_custom_call.1} parent=1 // loop_header_branch
      %22 = sbr.rel (%p20) target = $region8
    $region5: #{tpu_custom_call.1} parent=1 // loop_body
      %s24 = ssub.s32 %s19, 1
      %s25 = ssub.s32 %s19, 2
      %s26 = sadd.s32 %s19, 1
      %s27 = ssub.s32 %s19, %s26
      %p28 = scmp.eq.s32.totalorder %s27, 0
      %s30 = sadd.s32 %s29, 1
      %s31 = scalar_select %p28, %s29, %s30
      %p34 = pneg %p28
      %p35 = scmp.eq.s32.totalorder %s19, 1
      %p36 = por %p34, %p35
      %p37 = scmp.ne.s32.totalorder %s29, %s32
      %p38 = scmp.eq.s32.totalorder %s19, 0
      %p39 = por %p37, %p38
      %p40 = scmp.ne.s32.totalorder %s29, %s32
      %p41 = scmp.eq.s32.totalorder %s24, 1
      %p42 = por %p40, %p41
      %p43 = scmp.ne.s32.totalorder %s32, %s33
      %p44 = scmp.eq.s32.totalorder %s24, 0
      %p45 = por %p43, %p44
      %p46 = scmp.ne.s32.totalorder %s32, %s33
      %p47 = scmp.eq.s32.totalorder %s25, 1
      %p48 = por %p46, %p47
      %p50 = scmp.ne.s32.totalorder %s33, %s49
      %p51 = scmp.eq.s32.totalorder %s25, 0
      %p52 = por %p50, %p51
      %s54 = sadd.s32 %s53, 1
      %p57 = scmp.eq.s32.totalorder %s19, 1
      %p58 = scmp.ne.s32.totalorder %s53, %s55
      %p59 = scmp.eq.s32.totalorder %s19, 0
      %p60 = por %p58, %p59
      %p61 = scmp.ne.s32.totalorder %s53, %s55
      %p62 = scmp.eq.s32.totalorder %s24, 1
      %p63 = por %p61, %p62
      %p64 = scmp.ne.s32.totalorder %s55, %s56
      %p65 = scmp.eq.s32.totalorder %s24, 0
      %p66 = por %p64, %p65
      %p67 = scmp.ne.s32.totalorder %s55, %s56
      %p68 = scmp.eq.s32.totalorder %s25, 1
      %p69 = por %p67, %p68
      %p71 = scmp.ne.s32.totalorder %s56, %s70
      %p72 = scmp.eq.s32.totalorder %s25, 0
      %p73 = por %p71, %p72
      %s75 = sadd.s32 %s74, 1
      %p78 = scmp.eq.s32.totalorder %s19, 1
      %p79 = scmp.ne.s32.totalorder %s74, %s76
      %p80 = scmp.eq.s32.totalorder %s19, 0
      %p81 = por %p79, %p80
      %p82 = scmp.ne.s32.totalorder %s74, %s76
      %p83 = scmp.eq.s32.totalorder %s24, 1
      %p84 = por %p82, %p83
      %p85 = scmp.ne.s32.totalorder %s76, %s77
      %p86 = scmp.eq.s32.totalorder %s24, 0
      %p87 = por %p85, %p86
      %p88 = scmp.ne.s32.totalorder %s76, %s77
      %p89 = scmp.eq.s32.totalorder %s25, 1
      %p90 = por %p88, %p89
      %p92 = scmp.ne.s32.totalorder %s77, %s91
      %p93 = scmp.eq.s32.totalorder %s25, 0
      %p94 = por %p92, %p93
      %s96 = sadd.s32 %s95, 1
      %p99 = scmp.eq.s32.totalorder %s19, 1
      %p100 = scmp.ne.s32.totalorder %s95, %s97
      %p101 = scmp.eq.s32.totalorder %s19, 0
      %p102 = por %p100, %p101
      %p103 = scmp.ne.s32.totalorder %s95, %s97
      %p104 = scmp.eq.s32.totalorder %s24, 1
      %p105 = por %p103, %p104
      %p106 = scmp.ne.s32.totalorder %s97, %s98
      %p107 = scmp.eq.s32.totalorder %s24, 0
      %p108 = por %p106, %p107
      %p109 = scmp.ne.s32.totalorder %s97, %s98
      %p110 = scmp.eq.s32.totalorder %s25, 1
      %p111 = por %p109, %p110
      %p113 = scmp.ne.s32.totalorder %s98, %s112
      %p114 = scmp.eq.s32.totalorder %s25, 0
      %p115 = por %p113, %p114
      %s117 = sadd.s32 %s116, 1
      %p120 = scmp.eq.s32.totalorder %s19, 1
      %p121 = scmp.ne.s32.totalorder %s116, %s118
      %p122 = scmp.eq.s32.totalorder %s19, 0
      %p123 = por %p121, %p122
      %p124 = scmp.ne.s32.totalorder %s116, %s118
      %p125 = scmp.eq.s32.totalorder %s24, 1
      %p126 = por %p124, %p125
      %p127 = scmp.ne.s32.totalorder %s118, %s119
      %p128 = scmp.eq.s32.totalorder %s24, 0
      %p129 = por %p127, %p128
      %p130 = scmp.ne.s32.totalorder %s118, %s119
      %p131 = scmp.eq.s32.totalorder %s25, 1
      %p132 = por %p130, %p131
      %p134 = scmp.ne.s32.totalorder %s119, %s133
      %p135 = scmp.eq.s32.totalorder %s25, 0
      %p136 = por %p134, %p135
      %s137 = ssub.s32 %s19, %s26
      %p138 = scmp.eq.s32.totalorder %s137, 0
      %s140 = sadd.s32 %s139, 1
      %s141 = scalar_select %p138, %s139, %s140
      %p144 = pneg %p138
      %p145 = scmp.eq.s32.totalorder %s19, 1
      %p146 = por %p144, %p145
      %p147 = scmp.ne.s32.totalorder %s139, %s142
      %p148 = scmp.eq.s32.totalorder %s19, 0
      %p149 = por %p147, %p148
      %p150 = scmp.ne.s32.totalorder %s139, %s142
      %p151 = scmp.eq.s32.totalorder %s24, 1
      %p152 = por %p150, %p151
      %p153 = scmp.ne.s32.totalorder %s142, %s143
      %p154 = scmp.eq.s32.totalorder %s24, 0
      %p155 = por %p153, %p154
      %p156 = scmp.ne.s32.totalorder %s142, %s143
      %p157 = scmp.eq.s32.totalorder %s25, 1
      %p158 = por %p156, %p157
      %p160 = scmp.ne.s32.totalorder %s143, %s159
      %p161 = scmp.eq.s32.totalorder %s25, 0
      %p162 = por %p160, %p161
      %p163 = scmp.le.s32.totalorder 1, %s19
      %p164 = scmp.lt.s32.totalorder %s19, 3
      %p165 = pnand %p163, %p164
      %p166 = pneg %p165
      // Predicated region
      $region9: #{tpu_custom_call.1} parent=5 // pred_check
        _
      $region10: #{tpu_custom_call.1} parent=5 // pred_check_branch
        %168 = sbr.rel (%p165) target = $region12
      $region11: #{tpu_custom_call.1} parent=5 // pred_region
        %s169 = ssub.s32 %s19, 1
        // Predicated region
        $region13: #{tpu_custom_call.1} parent=11 // pred_check
          %p170 = pneg %p66
        $region14: #{tpu_custom_call.1} parent=11 // pred_check_branch
          %172 = sbr.rel (%p170) target = $region16
        $region15: #{tpu_custom_call.1} parent=11 // pred_region
          %174 = vsyncadd [#allocation6], 0
          %s175 = sshll.u32 %s1, 4
          %s176 = int_to_ptr.hbm [resolvable:$true] %s175
          %s177 = sshll.u32 [#allocation5], 4
          %s178 = int_to_ptr.vmem [resolvable:$true] %s177
          %183 = dma.hbm_to_vmem [thread:$0]  %s176, 3072, %s178, [#allocation6], 192, 192, 12
        $region16: #{tpu_custom_call.1} parent=11 // pred_fallthru
          _
        // Predicated region
        $region17: #{tpu_custom_call.1} parent=11 // pred_check
          %p184 = pneg %p87
        $region18: #{tpu_custom_call.1} parent=11 // pred_check_branch
          %186 = sbr.rel (%p184) target = $region20
        $region19: #{tpu_custom_call.1} parent=11 // pred_region
          %188 = vsyncadd [#allocation6], 0
          %s190 = sshll.u32 %s2, 4
          %s191 = int_to_ptr.hbm [resolvable:$true] %s190
          %s192 = sshll.u32 [#allocation7], 4
          %s193 = int_to_ptr.vmem [resolvable:$true] %s192
          %195 = dma.hbm_to_vmem [thread:$0]  %s191, 48, %s193, [#allocation6]
        $region20: #{tpu_custom_call.1} parent=11 // pred_fallthru
          _
        // Predicated region
        $region21: #{tpu_custom_call.1} parent=11 // pred_check
          %p196 = pneg %p108
        $region22: #{tpu_custom_call.1} parent=11 // pred_check_branch
          %198 = sbr.rel (%p196) target = $region24
        $region23: #{tpu_custom_call.1} parent=11 // pred_region
          %200 = vsyncadd [#allocation9], 0
          %s201 = sshll.u32 %s3, 4
          %s202 = int_to_ptr.hbm [resolvable:$true] %s201
          %s203 = sshll.u32 [#allocation8], 4
          %s204 = int_to_ptr.vmem [resolvable:$true] %s203
          %209 = dma.hbm_to_vmem [thread:$0]  %s202, 1024, %s204, [#allocation9], 64, 64, 4
        $region24: #{tpu_custom_call.1} parent=11 // pred_fallthru
          _
        // Predicated region
        $region25: #{tpu_custom_call.1} parent=11 // pred_check
          %p210 = pneg %p129
        $region26: #{tpu_custom_call.1} parent=11 // pred_check_branch
          %212 = sbr.rel (%p210) target = $region28
        $region27: #{tpu_custom_call.1} parent=11 // pred_region
          _
        $region28: #{tpu_custom_call.1} parent=11 // pred_fallthru
          _
      $region12: #{tpu_custom_call.1} parent=5 // pred_fallthru
        _
      %p213 = scmp.lt.s32.totalorder %s19, 2
      // Predicated region
      $region29: #{tpu_custom_call.1} parent=5 // pred_check
        %p214 = pneg %p213
      $region30: #{tpu_custom_call.1} parent=5 // pred_check_branch
        %216 = sbr.rel (%p214) target = $region32
      $region31: #{tpu_custom_call.1} parent=5 // pred_region
        // Predicated region
        $region33: #{tpu_custom_call.1} parent=31 // pred_check
          %p217 = pneg %p39
        $region34: #{tpu_custom_call.1} parent=31 // pred_check_branch
          %219 = sbr.rel (%p217) target = $region36
        $region35: #{tpu_custom_call.1} parent=31 // pred_region
          %s220 = sand.u32 %s29, 1
          %s221 = scalar_lea.sflag [#allocation3], %s220
          %s222 = sand.u32 %s29, 1
          %s223 = smul.addr %s222, 4
          %s224 = scalar_lea.vmem [#allocation2], %s223
          %226 = vsyncadd %s221, 0
          %s227 = smul.addr %s19, 4
          %s228 = scalar_lea.hbm %s0, %s227
          %s230 = sshll.u32 %s228, 4
          %s231 = int_to_ptr.hbm [resolvable:$true] %s230
          %s232 = sshll.u32 %s224, 4
          %s233 = int_to_ptr.vmem [resolvable:$true] %s232
          %235 = dma.hbm_to_vmem [thread:$0]  %s231, 64, %s233, %s221
        $region36: #{tpu_custom_call.1} parent=31 // pred_fallthru
          _
      $region32: #{tpu_custom_call.1} parent=5 // pred_fallthru
        _
      %p236 = scmp.le.s32.totalorder 1, %s19
      %p237 = scmp.lt.s32.totalorder %s19, 3
      %p238 = pnand %p236, %p237
      %p239 = pneg %p238
      // Predicated region
      $region37: #{tpu_custom_call.1} parent=5 // pred_check
        _
      $region38: #{tpu_custom_call.1} parent=5 // pred_check_branch
        %241 = sbr.rel (%p238) target = $region40
      $region39: #{tpu_custom_call.1} parent=5 // pred_region
        %s242 = ssub.s32 %s19, 1
        %s243 = sand.u32 %s32, 1
        %s244 = scalar_lea.sflag [#allocation3], %s243
        %s245 = sand.u32 %s32, 1
        %s246 = smul.addr %s245, 4
        %s247 = scalar_lea.vmem [#allocation2], %s246
        // Predicated region
        $region41: #{tpu_custom_call.1} parent=39 // pred_check
          %p248 = pneg %p45
        $region42: #{tpu_custom_call.1} parent=39 // pred_check_branch
          %250 = sbr.rel (%p248) target = $region44
        $region43: #{tpu_custom_call.1} parent=39 // pred_region
          %252 = dma.done %s244, 64
        $region44: #{tpu_custom_call.1} parent=39 // pred_fallthru
          _
        // Predicated region
        $region45: #{tpu_custom_call.1} parent=39 // pred_check
          %p253 = pneg %p66
        $region46: #{tpu_custom_call.1} parent=39 // pred_check_branch
          %255 = sbr.rel (%p253) target = $region48
        $region47: #{tpu_custom_call.1} parent=39 // pred_region
          %257 = dma.done [#allocation6], 3072
        $region48: #{tpu_custom_call.1} parent=39 // pred_fallthru
          _
        // Predicated region
        $region49: #{tpu_custom_call.1} parent=39 // pred_check
          %p258 = pneg %p87
        $region50: #{tpu_custom_call.1} parent=39 // pred_check_branch
          %260 = sbr.rel (%p258) target = $region52
        $region51: #{tpu_custom_call.1} parent=39 // pred_region
          %262 = dma.done [#allocation6], 48
        $region52: #{tpu_custom_call.1} parent=39 // pred_fallthru
          _
        // Predicated region
        $region53: #{tpu_custom_call.1} parent=39 // pred_check
          %p263 = pneg %p108
        $region54: #{tpu_custom_call.1} parent=39 // pred_check_branch
          %265 = sbr.rel (%p263) target = $region56
        $region55: #{tpu_custom_call.1} parent=39 // pred_region
          %267 = dma.done [#allocation9], 1024
        $region56: #{tpu_custom_call.1} parent=39 // pred_fallthru
          _
        %s268 = sand.u32 %s32, 1
        %s269 = scalar_lea.sflag [#allocation3], %s268
        %s270 = sand.u32 %s32, 1
        %s271 = smul.addr %s270, 4
        %s272 = scalar_lea.vmem [#allocation2], %s271
        %p273 = pneg %p45
        %p274 = pneg %p42
        %p275 = pneg %p66
        %p276 = pneg %p63
        %p277 = pneg %p87
        %p278 = pneg %p84
        %p279 = pneg %p108
        %p280 = pneg %p105
        %p281 = pneg %p129
        %p282 = pneg %p126
        %p283 = pneg %p155
        %p284 = pneg %p152
        %s285 = sand.u32 %s142, 1
        %s286 = scalar_lea.sflag [#allocation4], %s285
        %s287 = sand.u32 %s142, 1
        %s288 = smul.addr %s287, 8
        %s289 = scalar_lea.vmem [#allocation10], %s288
        %v291 = vld [vmem:[%s247] sm:$0xf]
        %v292 = vld [vmem:[#allocation5] sm:$0xff]
        %v293 = vld [vmem:[#allocation5 + $0x8] sm:$0xf]
        %v294 = vld [vmem:[#allocation5 + $0xc] sm:$0xff]
        %v295 = vld [vmem:[#allocation5 + $0x14] sm:$0xf]
        %v296 = vld [vmem:[#allocation5 + $0x18] sm:$0xff]
        %v297 = vld [vmem:[#allocation5 + $0x20] sm:$0xf]
        %v298 = vld [vmem:[#allocation5 + $0x24] sm:$0xff]
        %v299 = vld [vmem:[#allocation5 + $0x2c] sm:$0xf]
        %v300 = vld [vmem:[#allocation5 + $0x30] sm:$0xff]
        %v301 = vld [vmem:[#allocation5 + $0x38] sm:$0xf]
        %v302 = vld [vmem:[#allocation5 + $0x3c] sm:$0xff]
        %v303 = vld [vmem:[#allocation5 + $0x44] sm:$0xf]
        %v304 = vld [vmem:[#allocation5 + $0x48] sm:$0xff]
        %v305 = vld [vmem:[#allocation5 + $0x50] sm:$0xf]
        %v306 = vld [vmem:[#allocation5 + $0x54] sm:$0xff]
        %v307 = vld [vmem:[#allocation5 + $0x5c] sm:$0xf]
        %v308 = vld [vmem:[#allocation5 + $0x60] sm:$0xff]
        %v309 = vld [vmem:[#allocation5 + $0x68] sm:$0xf]
        %v310 = vld [vmem:[#allocation5 + $0x6c] sm:$0xff]
        %v311 = vld [vmem:[#allocation5 + $0x74] sm:$0xf]
        %v312 = vld [vmem:[#allocation5 + $0x78] sm:$0xff]
        %v313 = vld [vmem:[#allocation5 + $0x80] sm:$0xf]
        %v314 = vld [vmem:[#allocation5 + $0x84] sm:$0xff]
        %v315 = vld [vmem:[#allocation5 + $0x8c] sm:$0xf]
        %v316 = vld [vmem:[#allocation5 + $0x90] sm:$0xff]
        %v317 = vld [vmem:[#allocation5 + $0x98] sm:$0xf]
        %v318 = vld [vmem:[#allocation5 + $0x9c] sm:$0xff]
        %v319 = vld [vmem:[#allocation5 + $0xa4] sm:$0xf]
        %v320 = vld [vmem:[#allocation5 + $0xa8] sm:$0xff]
        %v321 = vld [vmem:[#allocation5 + $0xb0] sm:$0xf]
        %v322 = vld [vmem:[#allocation5 + $0xb4] sm:$0xff]
        %v323 = vld [vmem:[#allocation5 + $0xbc] sm:$0xf]
        %v324 = vld [vmem:[#allocation7] sm:$0x7]
        %v326 = vperm.slane %v324, 0
        %v327 = vperm.slane %v324, 1
        %v328 = vperm.slane %v324, 2
        %v364 = vunpack.c.l.b16 %v292
        %v365 = vunpack.c.h.b16 %v292
        %v366 = vunpack.c.l.b16 %v293
        %v367 = vunpack.c.l.b16 %v294
        %v368 = vunpack.c.h.b16 %v294
        %v369 = vunpack.c.l.b16 %v295
        %v370 = vunpack.c.l.b16 %v296
        %v371 = vunpack.c.h.b16 %v296
        %v372 = vunpack.c.l.b16 %v297
        %v373 = vunpack.c.l.b16 %v298
        %v374 = vunpack.c.h.b16 %v298
        %v375 = vunpack.c.l.b16 %v299
        %v376 = vunpack.c.l.b16 %v300
        %v377 = vunpack.c.h.b16 %v300
        %v378 = vunpack.c.l.b16 %v301
        %v379 = vunpack.c.l.b16 %v302
        %v380 = vunpack.c.h.b16 %v302
        %v381 = vunpack.c.l.b16 %v303
        %v382 = vunpack.c.l.b16 %v304
        %v383 = vunpack.c.h.b16 %v304
        %v384 = vunpack.c.l.b16 %v305
        %v385 = vunpack.c.l.b16 %v306
        %v386 = vunpack.c.h.b16 %v306
        %v387 = vunpack.c.l.b16 %v307
        %v388 = vunpack.c.l.b16 %v308
        %v389 = vunpack.c.h.b16 %v308
        %v390 = vunpack.c.l.b16 %v309
        %v391 = vunpack.c.l.b16 %v310
        %v392 = vunpack.c.h.b16 %v310
        %v393 = vunpack.c.l.b16 %v311
        %v394 = vunpack.c.l.b16 %v312
        %v395 = vunpack.c.h.b16 %v312
        %v396 = vunpack.c.l.b16 %v313
        %v397 = vunpack.c.l.b16 %v314
        %v398 = vunpack.c.h.b16 %v314
        %v399 = vunpack.c.l.b16 %v315
        %v400 = vunpack.c.l.b16 %v316
        %v401 = vunpack.c.h.b16 %v316
        %v402 = vunpack.c.l.b16 %v317
        %v403 = vunpack.c.l.b16 %v318
        %v404 = vunpack.c.h.b16 %v318
        %v405 = vunpack.c.l.b16 %v319
        %v406 = vunpack.c.l.b16 %v320
        %v407 = vunpack.c.h.b16 %v320
        %v408 = vunpack.c.l.b16 %v321
        %v409 = vunpack.c.l.b16 %v322
        %v410 = vunpack.c.h.b16 %v322
        %v411 = vunpack.c.l.b16 %v323
        %v412 = vpack.c.b16 %v367, %v364
        %v413 = vpack.c.b16 %v368, %v365
        %v414 = vpack.c.b16 %v369, %v366
        %v415 = vpack.c.b16 %v373, %v370
        %v416 = vpack.c.b16 %v374, %v371
        %v417 = vpack.c.b16 %v375, %v372
        %v418 = vpack.c.b16 %v379, %v376
        %v419 = vpack.c.b16 %v380, %v377
        %v420 = vpack.c.b16 %v381, %v378
        %v421 = vpack.c.b16 %v385, %v382
        %v422 = vpack.c.b16 %v386, %v383
        %v423 = vpack.c.b16 %v387, %v384
        %v424 = vpack.c.b16 %v391, %v388
        %v425 = vpack.c.b16 %v392, %v389
        %v426 = vpack.c.b16 %v393, %v390
        %v427 = vpack.c.b16 %v397, %v394
        %v428 = vpack.c.b16 %v398, %v395
        %v429 = vpack.c.b16 %v399, %v396
        %v430 = vpack.c.b16 %v403, %v400
        %v431 = vpack.c.b16 %v404, %v401
        %v432 = vpack.c.b16 %v405, %v402
        %v433 = vpack.c.b16 %v409, %v406
        %v434 = vpack.c.b16 %v410, %v407
        %v435 = vpack.c.b16 %v411, %v408
        %460 = vmatpush.bf16.msra.mxu0 %v433
        %461 = vmatpush.bf16.msra.mxu0 %v430
        %462 = vmatpush.bf16.msra.mxu0 %v427
        %463 = vmatpush.bf16.msra.mxu0 %v424
        %464 = vmatpush.bf16.msra.mxu0 %v421
        %465 = vmatpush.bf16.msra.mxu0 %v418
        %466 = vmatpush.bf16.msra.mxu0 %v415
        %467 = vmatpush.bf16.msra.mxu0 %v412
        %468 = vmatmul.bf16.gmra.mxu0 %v291
        %v469 = vpop.f32.mrf.mxu0
        %v470 = vadd.f32 %v326, %v469
        %v471 = vpop.f32.mrf.mxu0
        %472 = vdwg.mxu0
        %473 = vmatpush.bf16.msra.mxu0 %v434
        %474 = vmatpush.bf16.msra.mxu0 %v431
        %475 = vmatpush.bf16.msra.mxu0 %v428
        %476 = vmatpush.bf16.msra.mxu0 %v425
        %477 = vmatpush.bf16.msra.mxu0 %v422
        %478 = vmatpush.bf16.msra.mxu0 %v419
        %479 = vmatpush.bf16.msra.mxu0 %v416
        %480 = vmatpush.bf16.msra.mxu0 %v413
        %481 = vmatmul.bf16.gmra.mxu0 %v291
        %v482 = vpop.f32.mrf.mxu0
        %v483 = vadd.f32 %v327, %v482
        %v484 = vpop.f32.mrf.mxu0
        %485 = vdwg.mxu0
        %486 = vmatpush.bf16.msra.mxu0 %v435
        %487 = vmatpush.bf16.msra.mxu0 %v432
        %488 = vmatpush.bf16.msra.mxu0 %v429
        %489 = vmatpush.bf16.msra.mxu0 %v426
        %490 = vmatpush.bf16.msra.mxu0 %v423
        %491 = vmatpush.bf16.msra.mxu0 %v420
        %492 = vmatpush.bf16.msra.mxu0 %v417
        %493 = vmatpush.bf16.msra.mxu0 %v414
        %494 = vmatmul.bf16.gmra.mxu0 %v291
        %v495 = vpop.f32.mrf.mxu0
        %v496 = vadd.f32 %v328, %v495
        %v497 = vpop.f32.mrf.mxu0
        %498 = vdwg.mxu0
        %v499 = vpack.c.bf16 %v470, %v470
        %v500 = vpack.c.bf16 %v483, %v483
        %v501 = vpack.c.bf16 %v496, %v496
        %502 = vmatpush.bf16.xpose.msra.mxu0 0
        %503 = vmatpush.bf16.xpose.msra.mxu0 0
        %504 = vmatpush.bf16.xpose.msra.mxu0 0
        %505 = vmatpush.bf16.xpose.msra.mxu0 0
        %506 = vmatpush.bf16.xpose.msra.mxu0 0
        %507 = vmatpush.bf16.xpose.msra.mxu0 0
        %508 = vmatpush.bf16.xpose.msra.mxu0 0
        %509 = vmatpush.bf16.xpose.msra.mxu0 %v500
        %510 = vmatmul.bf16.gmra.mxu0 %v499
        %v511 = vpop.f32.mrf.mxu0
        %v512 = vadd.f32 0.0, %v511
        %v513 = vpop.f32.mrf.mxu0
        %514 = vdwg.mxu0
        %vm515 = vcmask 64512
        %v516 = vsel %vm515, %v512, -inf
        %517 = vmax.xlane.f32.xlu0 %v516
        %v518 = vpop.xlane.xlu0 %517
        %v519 = vsub.f32 %v512, %v518
        %v520 = vmul.f32 %v519, 1.442695
        %v521 = vpow.pop %v520
        %v522 = vsel %vm515, %v521, 0.0
        %523 = vadd.xlane.f32.xlu0 %v522
        %v524 = vpop.xlane.xlu0 %523
        %v525 = vpack.c.bf16 %v521, %v521
        %v527 = vsel %vm515, %v525, 0
        %vm529 = vcmask 1043456
        %v531 = vsel %vm529, %v501, 0
        %533 = vmatpush.bf16.msra.mxu0 0
        %534 = vmatpush.bf16.msra.mxu0 0
        %535 = vmatpush.bf16.msra.mxu0 0
        %536 = vmatpush.bf16.msra.mxu0 0
        %537 = vmatpush.bf16.msra.mxu0 0
        %538 = vmatpush.bf16.msra.mxu0 0
        %539 = vmatpush.bf16.msra.mxu0 0
        %540 = vmatpush.bf16.msra.mxu0 %v531
        %541 = vmatmul.bf16.gmra.mxu0 %v527
        %v542 = vpop.f32.mrf.mxu0
        %v543 = vadd.f32 0.0, %v542
        %v544 = vpop.f32.mrf.mxu0
        %545 = vdwg.mxu0
        %v546 = vrcp.pop %v524
        %v547 = vmul.f32 %v543, %v546
        %v548 = vpack.c.bf16 %v547, %v547
        %v549 = vld [vmem:[#allocation8] sm:$0xf]
        %v550 = vld [vmem:[#allocation8 + $0x4] sm:$0xf]
        %v551 = vld [vmem:[#allocation8 + $0x8] sm:$0xf]
        %v552 = vld [vmem:[#allocation8 + $0xc] sm:$0xf]
        %v553 = vld [vmem:[#allocation8 + $0x10] sm:$0xf]
        %v554 = vld [vmem:[#allocation8 + $0x14] sm:$0xf]
        %v555 = vld [vmem:[#allocation8 + $0x18] sm:$0xf]
        %v556 = vld [vmem:[#allocation8 + $0x1c] sm:$0xf]
        %v557 = vld [vmem:[#allocation8 + $0x20] sm:$0xf]
        %v558 = vld [vmem:[#allocation8 + $0x24] sm:$0xf]
        %v559 = vld [vmem:[#allocation8 + $0x28] sm:$0xf]
        %v560 = vld [vmem:[#allocation8 + $0x2c] sm:$0xf]
        %v561 = vld [vmem:[#allocation8 + $0x30] sm:$0xf]
        %v562 = vld [vmem:[#allocation8 + $0x34] sm:$0xf]
        %v563 = vld [vmem:[#allocation8 + $0x38] sm:$0xf]
        %v564 = vld [vmem:[#allocation8 + $0x3c] sm:$0xf]
        %v565 = vld [vmem:[%s4] sm:$0x1]
        %v567 = vperm.slane %v565, 0
        %v585 = vunpack.c.l.b16 %v549
        %v586 = vunpack.c.l.b16 %v550
        %v587 = vunpack.c.l.b16 %v551
        %v588 = vunpack.c.l.b16 %v552
        %v589 = vunpack.c.l.b16 %v553
        %v590 = vunpack.c.l.b16 %v554
        %v591 = vunpack.c.l.b16 %v555
        %v592 = vunpack.c.l.b16 %v556
        %v593 = vunpack.c.l.b16 %v557
        %v594 = vunpack.c.l.b16 %v558
        %v595 = vunpack.c.l.b16 %v559
        %v596 = vunpack.c.l.b16 %v560
        %v597 = vunpack.c.l.b16 %v561
        %v598 = vunpack.c.l.b16 %v562
        %v599 = vunpack.c.l.b16 %v563
        %v600 = vunpack.c.l.b16 %v564
        %v601 = vpack.c.b16 %v586, %v585
        %v602 = vpack.c.b16 %v588, %v587
        %v603 = vpack.c.b16 %v590, %v589
        %v604 = vpack.c.b16 %v592, %v591
        %v605 = vpack.c.b16 %v594, %v593
        %v606 = vpack.c.b16 %v596, %v595
        %v607 = vpack.c.b16 %v598, %v597
        %v608 = vpack.c.b16 %v600, %v599
        %617 = vmatpush.bf16.msra.mxu0 %v608
        %618 = vmatpush.bf16.msra.mxu0 %v607
        %619 = vmatpush.bf16.msra.mxu0 %v606
        %620 = vmatpush.bf16.msra.mxu0 %v605
        %621 = vmatpush.bf16.msra.mxu0 %v604
        %622 = vmatpush.bf16.msra.mxu0 %v603
        %623 = vmatpush.bf16.msra.mxu0 %v602
        %624 = vmatpush.bf16.msra.mxu0 %v601
        %625 = vmatmul.bf16.gmra.mxu0 %v548
        %v626 = vpop.f32.mrf.mxu0
        %v627 = vadd.f32 %v567, %v626
        %v628 = vpop.f32.mrf.mxu0
        %629 = vdwg.mxu0
        %630 = vst [vmem:[%s289] sm:$0xff] %v627
        %s631 = sand.u32 %s142, 1
        %s632 = scalar_lea.sflag [#allocation4], %s631
        %s633 = sand.u32 %s142, 1
        %s634 = smul.addr %s633, 8
        %s635 = scalar_lea.vmem [#allocation10], %s634
        // Predicated region
        $region57: #{tpu_custom_call.1} parent=39 // pred_check
          %p636 = pneg %p152
        $region58: #{tpu_custom_call.1} parent=39 // pred_check_branch
          %638 = sbr.rel (%p636) target = $region60
        $region59: #{tpu_custom_call.1} parent=39 // pred_region
          %640 = vsyncadd %s632, 0
          %s641 = smul.addr %s24, 8
          %s642 = scalar_lea.hbm %s5, %s641
          %s644 = sshll.u32 %s635, 4
          %s645 = int_to_ptr.vmem [resolvable:$true] %s644
          %s646 = sshll.u32 %s642, 4
          %s647 = int_to_ptr.hbm [resolvable:$true] %s646
          %649 = dma.vmem_to_hbm [thread:$0]  %s645, 128, %s647, %s632
        $region60: #{tpu_custom_call.1} parent=39 // pred_fallthru
          _
      $region40: #{tpu_custom_call.1} parent=5 // pred_fallthru
        _
      %p650 = scmp.le.s32.totalorder 2, %s19
      // Predicated region
      $region61: #{tpu_custom_call.1} parent=5 // pred_check
        %p651 = pneg %p650
      $region62: #{tpu_custom_call.1} parent=5 // pred_check_branch
        %653 = sbr.rel (%p651) target = $region64
      $region63: #{tpu_custom_call.1} parent=5 // pred_region
        %s654 = ssub.s32 %s19, 2
        // Predicated region
        $region65: #{tpu_custom_call.1} parent=63 // pred_check
          %p655 = pneg %p158
        $region66: #{tpu_custom_call.1} parent=63 // pred_check_branch
          %657 = sbr.rel (%p655) target = $region68
        $region67: #{tpu_custom_call.1} parent=63 // pred_region
          %s658 = sand.u32 %s143, 1
          %s659 = scalar_lea.sflag [#allocation4], %s658
          %s660 = sand.u32 %s143, 1
          %s661 = smul.addr %s660, 8
          %s662 = scalar_lea.vmem [#allocation10], %s661
          %664 = dma.done %s659, 128
        $region68: #{tpu_custom_call.1} parent=63 // pred_fallthru
          _
      $region64: #{tpu_custom_call.1} parent=5 // pred_fallthru
        _
    $region6: #{tpu_custom_call.1} parent=1 // loop_footer
      %s23 = sadd.s32 1, %s19
    $region7: #{tpu_custom_call.1} parent=1 // loop_footer_branch
      %18 = sbr.rel target = $region3
    $region8: #{tpu_custom_call.1} parent=1 // loop_exit
      _
    %665 = vsyncpa [#allocation3], 1
    %s666 = scalar_lea.sflag [#allocation3], 1
    %667 = vsyncpa %s666, 1
    %668 = vsyncpa [#allocation6], 1
    %669 = vsyncpa [#allocation9], 1
    %670 = vsyncpa [#allocation4], 1
    %s671 = scalar_lea.sflag [#allocation4], 1
    %672 = vsyncpa %s671, 1

</llo_original>
